<compile_context>
chip_gen: v7x
topology: tpu7x:2x2x1
jax: 0.10.0
libtpu: 0.0.40
codegen_flags: <defaults>
</compile_context>

<pallas_src>
import jax
import jax.numpy as jnp
from jax.experimental import pallas as pl
from jax.experimental.pallas import tpu as pltpu

HIDDEN = 64
LANE = 128        # TPU lane width: pad feature dims to this for unmasked stores
MAX_TILE_B = 512  # batch rows per grid step (>=512 ~ 85% of HBM roofline)


def _round_up(v, m):
    return ((v + m - 1) // m) * m


def qnet_kernel(x_ref, w1_ref, b1_ref, w2_ref, b2_ref, out_ref):
    """One batch tile of relu(x @ W1 + b1) @ W2 + b2 with f32 accumulation."""
    x = x_ref[...]                                                     # [TB, S]
    h = jnp.dot(x, w1_ref[...], preferred_element_type=jnp.float32)    # [TB, 128]
    h = jnp.maximum(h + b1_ref[...], 0.0)                              # f32 bias + ReLU (VPU)
    h = h.astype(w2_ref.dtype)                                         # match W2 dtype for MXU
    y = jnp.dot(h, w2_ref[...], preferred_element_type=jnp.float32)    # [TB, 128]
    out_ref[...] = (y + b2_ref[...]).astype(out_ref.dtype)             # lane-dense store


@jax.jit
def qnetwork_forward(x, w1, b1, w2, b2):
    batch, state_dim = x.shape
    hidden = w1.shape[1]
    action_dim = w2.shape[1]

    # Zero-pad hidden / action dims to the 128-lane width (bit-identical math:
    # ReLU(0)=0 and zero W2 rows/cols contribute nothing to the result).
    h_pad = _round_up(hidden, LANE)
    a_pad = _round_up(action_dim, LANE)
    w1p = jnp.pad(w1, ((0, 0), (0, h_pad - hidden)))
    b1p = jnp.pad(b1, ((0, 0), (0, h_pad - hidden)))
    w2p = jnp.pad(w2, ((0, h_pad - hidden), (0, a_pad - action_dim)))
    b2p = jnp.pad(b2, ((0, 0), (0, a_pad - action_dim)))

    # Batch tiling: pad batch to a multiple of the tile so every block is full.
    tile_b = min(_round_up(batch, 8), MAX_TILE_B)
    padded_b = _round_up(batch, tile_b)
    xp = jnp.pad(x, ((0, padded_b - batch), (0, 0)))
    grid = (padded_b // tile_b,)

    out = pl.pallas_call(
        qnet_kernel,
        out_shape=jax.ShapeDtypeStruct((padded_b, a_pad), jnp.float32),
        grid_spec=pltpu.PrefetchScalarGridSpec(
            num_scalar_prefetch=0,
            grid=grid,
            in_specs=[
                # x streamed one batch tile per grid step (double-buffered DMA).
                pl.BlockSpec((tile_b, state_dim), lambda i: (i, 0)),
                # Weights / biases: constant index_map -> DMA'd once, VMEM-resident.
                pl.BlockSpec((state_dim, h_pad), lambda i: (0, 0)),
                pl.BlockSpec((1, h_pad), lambda i: (0, 0)),
                pl.BlockSpec((h_pad, a_pad), lambda i: (0, 0)),
                pl.BlockSpec((1, a_pad), lambda i: (0, 0)),
            ],
            out_specs=pl.BlockSpec((tile_b, a_pad), lambda i: (i, 0)),
        ),
        compiler_params=pltpu.CompilerParams(
            # Independent batch tiles: shard across TensorCores on v7x megacore.
            dimension_semantics=("parallel",),
        ),
    )(xp, w1p, b1p, w2p, b2p)

    # Strip batch and lane padding.
    return out[:batch, :action_dim]


def init_params(key, state_dim, action_dim, hidden=HIDDEN, dtype=jnp.float32):
    """Deterministic PyTorch-style uniform(-1/sqrt(fan_in), 1/sqrt(fan_in)) init."""
    k1, k2, k3, k4 = jax.random.split(key, 4)
    bound1 = 1.0 / jnp.sqrt(jnp.float32(state_dim))
    bound2 = 1.0 / jnp.sqrt(jnp.float32(hidden))
    w1 = jax.random.uniform(k1, (state_dim, hidden), jnp.float32, -bound1, bound1).astype(dtype)
    b1 = jax.random.uniform(k2, (1, hidden), jnp.float32, -bound1, bound1).astype(jnp.float32)
    w2 = jax.random.uniform(k3, (hidden, action_dim), jnp.float32, -bound2, bound2).astype(dtype)
    b2 = jax.random.uniform(k4, (1, action_dim), jnp.float32, -bound2, bound2).astype(jnp.float32)
    return w1, b1, w2, b2


if __name__ == "__main__":
    state_dim = 16
    action_dim = 8
    batch = 8

    key = jax.random.PRNGKey(0)
    kx, kp = jax.random.split(key)
    x = jax.random.normal(kx, (batch, state_dim), jnp.float32)
    # f32 params for a tight correctness check; on v6e/v7x pass dtype=jnp.bfloat16
    # (and x.astype(bf16)) to halve HBM traffic -- the kernel accumulates in f32.
    w1, b1, w2, b2 = init_params(kp, state_dim, action_dim)

    out = qnetwork_forward(x, w1, b1, w2, b2)
    jax.block_until_ready(out)

    # Reference check in plain JAX.
    ref = jnp.maximum(x @ w1 + b1, 0.0) @ w2 + b2
    assert out.shape == (batch, action_dim)
    assert jnp.allclose(out, ref, atol=1e-5, rtol=1e-5)

    # Also exercise a multi-tile grid (batch > MAX_TILE_B, non-multiple) once.
    big_b = 1030
    xb = jax.random.normal(kx, (big_b, state_dim), jnp.float32)
    out_big = qnetwork_forward(xb, w1, b1, w2, b2)
    jax.block_until_ready(out_big)
    ref_big = jnp.maximum(xb @ w1 + b1, 0.0) @ w2 + b2
    assert out_big.shape == (big_b, action_dim)
    assert jnp.allclose(out_big, ref_big, atol=1e-4, rtol=1e-5)

    print("KERNEL_OK")
</pallas_src>

<mosaic_0001>
module attributes {stable_mosaic.version = 11 : i64} {
  func.func @qnet_kernel(%arg0: i32, %arg1: memref<8x16xf32, #tpu.memory_space<vmem>>, %arg2: memref<16x128xf32, #tpu.memory_space<vmem>>, %arg3: memref<1x128xf32, #tpu.memory_space<vmem>>, %arg4: memref<128x128xf32, #tpu.memory_space<vmem>>, %arg5: memref<1x128xf32, #tpu.memory_space<vmem>>, %arg6: memref<8x128xf32, #tpu.memory_space<vmem>>) attributes {dimension_semantics = [#tpu.dimension_semantics<parallel>], iteration_bounds = array<i64: 1>, scalar_prefetch = 0 : i64, scratch_operands = 0 : i64, tpu.core_type = #tpu.core_type<tc>, window_params = [{transform_indices = @transform_0, window_bounds = array<i64: 8, 16>}, {pipeline_mode = #tpu.pipeline_mode<synchronous>, transform_indices = @transform_1, window_bounds = array<i64: 16, 128>}, {pipeline_mode = #tpu.pipeline_mode<synchronous>, transform_indices = @transform_2, window_bounds = array<i64: 1, 128>}, {pipeline_mode = #tpu.pipeline_mode<synchronous>, transform_indices = @transform_3, window_bounds = array<i64: 128, 128>}, {pipeline_mode = #tpu.pipeline_mode<synchronous>, transform_indices = @transform_4, window_bounds = array<i64: 1, 128>}, {transform_indices = @transform_5, window_bounds = array<i64: 8, 128>}]} {
    %c0 = arith.constant 0 : index
    %c0_0 = arith.constant 0 : index
    %0 = vector.load %arg1[%c0, %c0_0] : memref<8x16xf32, #tpu.memory_space<vmem>>, vector<8x16xf32>
    %c0_1 = arith.constant 0 : index
    %c0_2 = arith.constant 0 : index
    %1 = vector.load %arg2[%c0_1, %c0_2] : memref<16x128xf32, #tpu.memory_space<vmem>>, vector<16x128xf32>
    %cst = arith.constant dense<0.000000e+00> : vector<8x128xf32>
    %2 = tpu.matmul %0, %1, %cst {dimension_numbers = #tpu.dot_dimension_numbers<[1], [0], [0], [1], [0, 0, 1, 1], [], []>} : vector<8x16xf32>, vector<16x128xf32>, vector<8x128xf32> -> vector<8x128xf32>
    %c0_3 = arith.constant 0 : index
    %c0_4 = arith.constant 0 : index
    %3 = vector.load %arg3[%c0_3, %c0_4] : memref<1x128xf32, #tpu.memory_space<vmem>>, vector<1x128xf32>
    %4 = vector.broadcast %3 : vector<1x128xf32> to vector<8x128xf32>
    %5 = arith.addf %2, %4 : vector<8x128xf32>
    %cst_5 = arith.constant 0.000000e+00 : f32
    %6 = vector.broadcast %cst_5 : f32 to vector<8x128xf32>
    %7 = arith.maximumf %5, %6 : vector<8x128xf32>
    %c0_6 = arith.constant 0 : index
    %c0_7 = arith.constant 0 : index
    %8 = vector.load %arg4[%c0_6, %c0_7] : memref<128x128xf32, #tpu.memory_space<vmem>>, vector<128x128xf32>
    %cst_8 = arith.constant dense<0.000000e+00> : vector<8x128xf32>
    %9 = tpu.matmul %7, %8, %cst_8 {dimension_numbers = #tpu.dot_dimension_numbers<[1], [0], [0], [1], [0, 0, 1, 1], [], []>} : vector<8x128xf32>, vector<128x128xf32>, vector<8x128xf32> -> vector<8x128xf32>
    %c0_9 = arith.constant 0 : index
    %c0_10 = arith.constant 0 : index
    %10 = vector.load %arg5[%c0_9, %c0_10] : memref<1x128xf32, #tpu.memory_space<vmem>>, vector<1x128xf32>
    %11 = vector.broadcast %10 : vector<1x128xf32> to vector<8x128xf32>
    %12 = arith.addf %9, %11 : vector<8x128xf32>
    %c0_11 = arith.constant 0 : index
    %c0_12 = arith.constant 0 : index
    %13 = vector.load %arg6[%c0_11, %c0_12] : memref<8x128xf32, #tpu.memory_space<vmem>>, vector<8x128xf32>
    tpu.vector_store %arg6[%c0_11, %c0_12], %12 {strides = array<i32>} : memref<8x128xf32, #tpu.memory_space<vmem>>, vector<8x128xf32>,
    return
  }
  func.func @transform_0(%arg0: i32) -> (i32, i32) {
    %c0_i32 = arith.constant 0 : i32
    %c0_i32_0 = arith.constant 0 : i32
    return %arg0, %c0_i32 : i32, i32
  }
  func.func @transform_1(%arg0: i32) -> (i32, i32) {
    %c0_i32 = arith.constant 0 : i32
    %c0_i32_0 = arith.constant 0 : i32
    %c0_i32_1 = arith.constant 0 : i32
    return %c0_i32, %c0_i32_0 : i32, i32
  }
  func.func @transform_2(%arg0: i32) -> (i32, i32) {
    %c0_i32 = arith.constant 0 : i32
    %c0_i32_0 = arith.constant 0 : i32
    %c0_i32_1 = arith.constant 0 : i32
    return %c0_i32, %c0_i32_0 : i32, i32
  }
  func.func @transform_3(%arg0: i32) -> (i32, i32) {
    %c0_i32 = arith.constant 0 : i32
    %c0_i32_0 = arith.constant 0 : i32
    %c0_i32_1 = arith.constant 0 : i32
    return %c0_i32, %c0_i32_0 : i32, i32
  }
  func.func @transform_4(%arg0: i32) -> (i32, i32) {
    %c0_i32 = arith.constant 0 : i32
    %c0_i32_0 = arith.constant 0 : i32
    %c0_i32_1 = arith.constant 0 : i32
    return %c0_i32, %c0_i32_0 : i32, i32
  }
  func.func @transform_5(%arg0: i32) -> (i32, i32) {
    %c0_i32 = arith.constant 0 : i32
    %c0_i32_0 = arith.constant 0 : i32
    return %arg0, %c0_i32 : i32, i32
  }
}

</mosaic_0001>

<llo_original>
// kernel: qnetwork_forward.1
$region0: #{qnetwork_forward.1}
  #allocation0 [shape = 'u32[]', space=smem, size = 0x4, offset = 0x4, fixed_abs, tag = 'smem constant byte address 0x4 - core index']
  #allocation1 [shape = 'u32[144,128]{1,0:T(1,128)}', space=vmem, size = 0x12000, scoped, tag = 'internal scratch']
  %s0 = inlined_call_operand.vmem [shape: f32[8,16], index: 0, kind: input, shape index: {}]
  %s1 = inlined_call_operand.vmem [shape: f32[16,128], index: 1, kind: input, shape index: {}]
  %s2 = inlined_call_operand.vmem [shape: f32[1,128], index: 2, kind: input, shape index: {}]
  %s3 = inlined_call_operand.vmem [shape: f32[128,128], index: 3, kind: input, shape index: {}]
  %s4 = inlined_call_operand.vmem [shape: f32[1,128], index: 4, kind: input, shape index: {}]
  %s5 = inlined_call_operand.hbm [shape: f32[8,128], index: 5, kind: output, shape index: {}]
  %s6 = sld [smem:[#allocation0]]
  $region30: #{qnetwork_forward.1} parent=0
    _
  %s8 = ssub.s32 1, %s6
  %s9 = scalar_select 0, %s8, %s6
  $region1: #{qnetwork_forward.1} parent=0
    #allocation2 [shape = 'u8[4096]{0}', space=vmem, size = 0x1000, scoped, tag = 'output window, operand 0, single buffered']
    #allocation3 [shape = 's32[1]{0}', space=sflag, size = 0x4, scoped, tag = 'scoped memory for qnetwork_forward.1']
    %10 = vsyncpa [#allocation3], 0
    // Predicated region
    $region2: #{qnetwork_forward.1} parent=1 // pred_check
      _
    $region3: #{qnetwork_forward.1} parent=1 // pred_check_branch
      %12 = sbr.rel (0) target = $region5
    $region4: #{qnetwork_forward.1} parent=1 // pred_region
      _
    $region5: #{qnetwork_forward.1} parent=1 // pred_fallthru
      _
    // Predicated region
    $region6: #{qnetwork_forward.1} parent=1 // pred_check
      _
    $region7: #{qnetwork_forward.1} parent=1 // pred_check_branch
      %14 = sbr.rel (0) target = $region9
    $region8: #{qnetwork_forward.1} parent=1 // pred_region
      _
    $region9: #{qnetwork_forward.1} parent=1 // pred_fallthru
      _
    // Predicated region
    $region10: #{qnetwork_forward.1} parent=1 // pred_check
      _
    $region11: #{qnetwork_forward.1} parent=1 // pred_check_branch
      %16 = sbr.rel (0) target = $region13
    $region12: #{qnetwork_forward.1} parent=1 // pred_region
      _
    $region13: #{qnetwork_forward.1} parent=1 // pred_fallthru
      _
    // Predicated region
    $region14: #{qnetwork_forward.1} parent=1 // pred_check
      _
    $region15: #{qnetwork_forward.1} parent=1 // pred_check_branch
      %18 = sbr.rel (0) target = $region17
    $region16: #{qnetwork_forward.1} parent=1 // pred_region
      _
    $region17: #{qnetwork_forward.1} parent=1 // pred_fallthru
      _
    // Predicated region
    $region18: #{qnetwork_forward.1} parent=1 // pred_check
      _
    $region19: #{qnetwork_forward.1} parent=1 // pred_check_branch
      %20 = sbr.rel (0) target = $region21
    $region20: #{qnetwork_forward.1} parent=1 // pred_region
      _
    $region21: #{qnetwork_forward.1} parent=1 // pred_fallthru
      _
    %v21 = vld [vmem:[%s0] sm:$0xff]
    %v22 = vld [vmem:[%s1] sm:$0xff]
    %v23 = vld [vmem:[%s1 + $0x8] sm:$0xff]
    %v24 = vld [vmem:[%s2] sm:$0x1]
    %v26 = vlaneseq
    %v27 = vshrl.u32 %v26, 7
    %v28 = vsub.s32 0, %v27
    %v29 = vrot.slane %v24, %v28
    %vm31 = vcmask 130048
    %v33 = vsel %vm31, %v21, 0
    %35 = vmatprep.subr.mxu0 0.0
    %36 = vmatpush1.msra.mxu0 %v22
    %37 = vmatprep.subr.mxu0 0.0
    %38 = vmatpush1.msra.mxu0 %v23
    %39 = vmatprep.subr.mxu0 0.0
    %40 = vmatpush1.msra.mxu0 0.0
    %41 = vmatprep.subr.mxu0 0.0
    %42 = vmatpush1.msra.mxu0 0.0
    %43 = vmatprep.subr.mxu0 0.0
    %44 = vmatpush1.msra.mxu0 0.0
    %45 = vmatprep.subr.mxu0 0.0
    %46 = vmatpush1.msra.mxu0 0.0
    %47 = vmatprep.subr.mxu0 0.0
    %48 = vmatpush1.msra.mxu0 0.0
    %49 = vmatprep.subr.mxu0 0.0
    %50 = vmatpush1.msra.mxu0 0.0
    %51 = vmatprep.subr.mxu0 0.0
    %52 = vmatpush1.msra.mxu0 0.0
    %53 = vmatprep.subr.mxu0 0.0
    %54 = vmatpush1.msra.mxu0 0.0
    %55 = vmatprep.subr.mxu0 0.0
    %56 = vmatpush1.msra.mxu0 0.0
    %57 = vmatprep.subr.mxu0 0.0
    %58 = vmatpush1.msra.mxu0 0.0
    %59 = vmatprep.subr.mxu0 0.0
    %60 = vmatpush1.msra.mxu0 0.0
    %61 = vmatprep.subr.mxu0 0.0
    %62 = vmatpush1.msra.mxu0 0.0
    %63 = vmatprep.subr.mxu0 0.0
    %64 = vmatpush1.msra.mxu0 0.0
    %65 = vmatprep.subr.mxu0 0.0
    %66 = vmatpush1.msra.mxu0 0.0
    %67 = vmatprep.subr.mxu0 0.0
    %68 = vmatpush1.msra.mxu0 0.0
    %69 = vmatprep.subr.mxu0 0.0
    %70 = vmatpush1.msra.mxu0 0.0
    %71 = vmatprep.subr.mxu0 0.0
    %72 = vmatpush1.msra.mxu0 0.0
    %73 = vmatprep.subr.mxu0 0.0
    %74 = vmatpush1.msra.mxu0 0.0
    %75 = vmatprep.subr.mxu0 0.0
    %76 = vmatpush1.msra.mxu0 0.0
    %77 = vmatprep.subr.mxu0 0.0
    %78 = vmatpush1.msra.mxu0 0.0
    %79 = vmatprep.subr.mxu0 0.0
    %80 = vmatpush1.msra.mxu0 0.0
    %81 = vmatprep.subr.mxu0 0.0
    %82 = vmatpush1.msra.mxu0 0.0
    %83 = vmatprep.subr.mxu0 0.0
    %84 = vmatpush1.msra.mxu0 0.0
    %85 = vmatprep.subr.mxu0 0.0
    %86 = vmatpush1.msra.mxu0 0.0
    %87 = vmatprep.subr.mxu0 0.0
    %88 = vmatpush1.msra.mxu0 0.0
    %89 = vmatprep.subr.mxu0 0.0
    %90 = vmatpush1.msra.mxu0 0.0
    %91 = vmatprep.subr.mxu0 0.0
    %92 = vmatpush1.msra.mxu0 0.0
    %93 = vmatprep.subr.mxu0 0.0
    %94 = vmatpush1.msra.mxu0 0.0
    %95 = vmatprep.subr.mxu0 0.0
    %96 = vmatpush1.msra.mxu0 0.0
    %97 = vmatprep.subr.mxu0 0.0
    %98 = vmatpush1.msra.mxu0 0.0
    %99 = vmatprep.mubr.f32.mxu0 0.0
    %100 = vmatmul.mubr.f32.gmra.mrb[0].mxu0 %v33
    %v101 = vpop.f32.mrb[0].mxu0
    %v102 = vadd.f32 %v29, %v101
    %v103 = vpop.f32.mrb[0].mxu0
    %104 = vdwg.mxu0
    %v105 = vmax.f32 %v102, 0.0
    %v106 = vld [vmem:[%s3] sm:$0xff]
    %v107 = vld [vmem:[%s3 + $0x8] sm:$0xff]
    %v108 = vld [vmem:[%s3 + $0x10] sm:$0xff]
    %v109 = vld [vmem:[%s3 + $0x18] sm:$0xff]
    %v110 = vld [vmem:[%s3 + $0x20] sm:$0xff]
    %v111 = vld [vmem:[%s3 + $0x28] sm:$0xff]
    %v112 = vld [vmem:[%s3 + $0x30] sm:$0xff]
    %v113 = vld [vmem:[%s3 + $0x38] sm:$0xff]
    %v114 = vld [vmem:[%s3 + $0x40] sm:$0xff]
    %v115 = vld [vmem:[%s3 + $0x48] sm:$0xff]
    %v116 = vld [vmem:[%s3 + $0x50] sm:$0xff]
    %v117 = vld [vmem:[%s3 + $0x58] sm:$0xff]
    %v118 = vld [vmem:[%s3 + $0x60] sm:$0xff]
    %v119 = vld [vmem:[%s3 + $0x68] sm:$0xff]
    %v120 = vld [vmem:[%s3 + $0x70] sm:$0xff]
    %v121 = vld [vmem:[%s3 + $0x78] sm:$0xff]
    %v122 = vld [vmem:[%s4] sm:$0x1]
    %v124 = vlaneseq
    %v125 = vshrl.u32 %v124, 7
    %v126 = vsub.s32 0, %v125
    %v127 = vrot.slane %v122, %v126
    %129 = vmatprep.subr.mxu0 0.0
    %130 = vmatpush1.msra.mxu0 %v106
    %131 = vmatprep.subr.mxu0 0.0
    %132 = vmatpush1.msra.mxu0 %v107
    %133 = vmatprep.subr.mxu0 0.0
    %134 = vmatpush1.msra.mxu0 %v108
    %135 = vmatprep.subr.mxu0 0.0
    %136 = vmatpush1.msra.mxu0 %v109
    %137 = vmatprep.subr.mxu0 0.0
    %138 = vmatpush1.msra.mxu0 %v110
    %139 = vmatprep.subr.mxu0 0.0
    %140 = vmatpush1.msra.mxu0 %v111
    %141 = vmatprep.subr.mxu0 0.0
    %142 = vmatpush1.msra.mxu0 %v112
    %143 = vmatprep.subr.mxu0 0.0
    %144 = vmatpush1.msra.mxu0 %v113
    %145 = vmatprep.subr.mxu0 0.0
    %146 = vmatpush1.msra.mxu0 %v114
    %147 = vmatprep.subr.mxu0 0.0
    %148 = vmatpush1.msra.mxu0 %v115
    %149 = vmatprep.subr.mxu0 0.0
    %150 = vmatpush1.msra.mxu0 %v116
    %151 = vmatprep.subr.mxu0 0.0
    %152 = vmatpush1.msra.mxu0 %v117
    %153 = vmatprep.subr.mxu0 0.0
    %154 = vmatpush1.msra.mxu0 %v118
    %155 = vmatprep.subr.mxu0 0.0
    %156 = vmatpush1.msra.mxu0 %v119
    %157 = vmatprep.subr.mxu0 0.0
    %158 = vmatpush1.msra.mxu0 %v120
    %159 = vmatprep.subr.mxu0 0.0
    %160 = vmatpush1.msra.mxu0 %v121
    %161 = vmatprep.subr.mxu0 0.0
    %162 = vmatpush1.msra.mxu0 0.0
    %163 = vmatprep.subr.mxu0 0.0
    %164 = vmatpush1.msra.mxu0 0.0
    %165 = vmatprep.subr.mxu0 0.0
    %166 = vmatpush1.msra.mxu0 0.0
    %167 = vmatprep.subr.mxu0 0.0
    %168 = vmatpush1.msra.mxu0 0.0
    %169 = vmatprep.subr.mxu0 0.0
    %170 = vmatpush1.msra.mxu0 0.0
    %171 = vmatprep.subr.mxu0 0.0
    %172 = vmatpush1.msra.mxu0 0.0
    %173 = vmatprep.subr.mxu0 0.0
    %174 = vmatpush1.msra.mxu0 0.0
    %175 = vmatprep.subr.mxu0 0.0
    %176 = vmatpush1.msra.mxu0 0.0
    %177 = vmatprep.subr.mxu0 0.0
    %178 = vmatpush1.msra.mxu0 0.0
    %179 = vmatprep.subr.mxu0 0.0
    %180 = vmatpush1.msra.mxu0 0.0
    %181 = vmatprep.subr.mxu0 0.0
    %182 = vmatpush1.msra.mxu0 0.0
    %183 = vmatprep.subr.mxu0 0.0
    %184 = vmatpush1.msra.mxu0 0.0
    %185 = vmatprep.subr.mxu0 0.0
    %186 = vmatpush1.msra.mxu0 0.0
    %187 = vmatprep.subr.mxu0 0.0
    %188 = vmatpush1.msra.mxu0 0.0
    %189 = vmatprep.subr.mxu0 0.0
    %190 = vmatpush1.msra.mxu0 0.0
    %191 = vmatprep.subr.mxu0 0.0
    %192 = vmatpush1.msra.mxu0 0.0
    %193 = vmatprep.mubr.f32.mxu0 0.0
    %194 = vmatmul.mubr.f32.gmra.mrb[0].mxu0 %v105
    %v195 = vpop.f32.mrb[0].mxu0
    %v196 = vadd.f32 %v127, %v195
    %v197 = vpop.f32.mrb[0].mxu0
    %198 = vdwg.mxu0
    %199 = vst [vmem:[#allocation2] sm:$0xff] %v196
    // Predicated region
    $region22: #{qnetwork_forward.1} parent=1 // pred_check
      _
    $region23: #{qnetwork_forward.1} parent=1 // pred_check_branch
      %201 = sbr.rel (0) target = $region25
    $region24: #{qnetwork_forward.1} parent=1 // pred_region
      %s203 = ssub.s32 128, 128
      %204 = vsyncadd [#allocation3], %s203
      %s206 = sshll.u32 [#allocation2], 4
      %s207 = int_to_ptr.vmem [resolvable:$true] %s206
      %209 = dma.vmem_to_hbm [thread:$0]  %s207, 128, %s5, [#allocation3]
    $region25: #{qnetwork_forward.1} parent=1 // pred_fallthru
      _
    // Predicated region
    $region26: #{qnetwork_forward.1} parent=1 // pred_check
      _
    $region27: #{qnetwork_forward.1} parent=1 // pred_check_branch
      %211 = sbr.rel (0) target = $region29
    $region28: #{qnetwork_forward.1} parent=1 // pred_region
      %212 = dma.done [#allocation3], 128
    $region29: #{qnetwork_forward.1} parent=1 // pred_fallthru
      _
    %213 = vsyncpa [#allocation3], 1

</llo_original>
